<compile_context>
chip_gen: v6e
topology: v6e:2x2x1
jax: 0.10.0
libtpu: 0.0.40
codegen_flags: <defaults>
</compile_context>

<pallas_src>
import functools
import math

import jax
import jax.numpy as jnp
from jax import lax
from jax.experimental import pallas as pl
from jax.experimental.pallas import tpu as pltpu

_LANE = 128
_SUBLANE = 8


# ---------------------------------------------------------------------------
# Hardware-aware sizing helpers
# ---------------------------------------------------------------------------
def _round_up(v: int, m: int) -> int:
    return ((v + m - 1) // m) * m


def _vmem_limit_bytes() -> int:
    """~75% of physical VMEM: 96 MiB on v5e/v6e (128 MiB), 48 MiB on v7x (64 MiB)."""
    phys = 64 * 1024 * 1024  # conservative fallback (v7x-sized)
    try:
        info = pltpu.get_tpu_info()
        phys = int(getattr(info, "vmem_capacity_bytes", phys) or phys)
    except Exception:
        pass
    return min(100 * 1024 * 1024, (phys * 3) // 4)


def _lane_chunk(dim: int, cap: int, *, must_divide: bool) -> int:
    """Chunk size along a lane-major axis of extent `dim`, <= cap.

    Prefers the largest multiple-of-128 divisor of `dim`.  If none exists:
      must_divide=True  -> full `dim` (single chunk)
      must_divide=False -> a plain multiple of 128 (kernel masks the ragged tail)
    """
    if dim <= cap:
        return dim
    t = (cap // _LANE) * _LANE
    while t >= _LANE:
        if dim % t == 0:
            return t
        t -= _LANE
    if must_divide:
        return dim
    return (cap // _LANE) * _LANE


def _fused_footprint(tm, tk, tn, nj, d_model, d_ff, isz, w2sz) -> int:
    x_bytes = 2 * tm * tk * isz                     # x tile, double-buffered
    w13_bytes = 2 * 2 * d_model * tk * isz          # W1 + W3 tiles, double-buffered
    out_bytes = 2 * tm * d_ff * isz                 # revisited output block
    acc_bytes = 2 * tm * d_model * 4                # gate + up f32 accumulators
    w2_bytes = (2 if nj > 1 else 1) * tn * d_model * w2sz
    return x_bytes + w13_bytes + out_bytes + acc_bytes + w2_bytes


def _select_tiles(m, d_model, d_ff, isz, w2sz, budget):
    """Largest (tm, tk, tn) fitting the VMEM budget; big tm first (it divides
    how many times W1/W3/W2 are re-streamed from HBM), then big K chunks."""
    m_cap = m if m <= _SUBLANE else _round_up(m, _SUBLANE)
    tm_cands = sorted({min(t, m_cap) for t in (1024, 512, 256, 128, 64, 32, 16, 8)},
                      reverse=True)
    for tm in tm_cands:
        for kcap in (1024, 512, 256, 128):
            tk = _lane_chunk(d_ff, kcap, must_divide=False)
            for ncap in (512, 256, 128):
                tn = _lane_chunk(d_ff, ncap, must_divide=True)
                nj = d_ff // tn if d_ff % tn == 0 else 1
                if _fused_footprint(tm, tk, tn, nj, d_model, d_ff, isz, w2sz) <= budget:
                    return tm, tk, tn
    # Nothing fits the budget (pathological shapes): take the smallest config.
    return (tm_cands[-1],
            _lane_chunk(d_ff, 128, must_divide=False),
            _lane_chunk(d_ff, 128, must_divide=True))


# ---------------------------------------------------------------------------
# Fused SwiGLU kernel:  gate/up projections + silu*mul + W2 down-projection
# ---------------------------------------------------------------------------
def _swiglu_fused_kernel(x_ref, w1_ref, w3_ref, w2_hbm, o_ref,
                         gate_acc, up_acc, w2_buf, w2_sem,
                         *, d_ff, tk, tn, nj, ragged_k, cast_hidden_to):
    # x_ref : (tm, tk)        activation tile, d_ff chunk k
    # w1/w3 : (d_model, tk)   gate / up weight tiles (full d_model rows)
    # w2_hbm: (d_ff, d_model) full down-proj weight, left in HBM (manual DMA)
    # o_ref : (tm, d_ff)      fused output block (revisited across k)
    k = pl.program_id(1)
    nk = pl.num_programs(1)
    dn = (((1,), (1,)), ((), ()))  # contract the last dim of both operands (x @ W.T)

    def start_w2_fetch(off, slot):
        pltpu.make_async_copy(w2_hbm.at[pl.ds(off, tn), :],
                              w2_buf.at[slot], w2_sem.at[slot]).start()

    def wait_w2(slot):
        pltpu.make_async_copy(w2_hbm.at[pl.ds(0, tn), :],
                              w2_buf.at[slot], w2_sem.at[slot]).wait()

    # --- prologue: zero accumulators; prefetch the first W2 tile so its DMA
    # hides under the whole stage-1 contraction --------------------------------
    @pl.when(k == 0)
    def _():
        gate_acc[...] = jnp.zeros_like(gate_acc)
        up_acc[...] = jnp.zeros_like(up_acc)
        start_w2_fetch(0, 0)

    # --- stage 1: gate / up projections for this d_ff chunk -------------------
    x = x_ref[...]
    w1 = w1_ref[...]
    w3 = w3_ref[...]
    if ragged_k:
        # Mask the ragged d_ff tail instead of falling back to a huge full-K block.
        col = lax.broadcasted_iota(jnp.int32, (1, tk), 1)
        valid = (k * tk + col) < d_ff
        x = jnp.where(valid, x, jnp.zeros((), x.dtype))
        w1 = jnp.where(valid, w1, jnp.zeros((), w1.dtype))
        w3 = jnp.where(valid, w3, jnp.zeros((), w3.dtype))

    gate_acc[...] += lax.dot_general(x, w1, dn, preferred_element_type=jnp.float32)
    up_acc[...] += lax.dot_general(x, w3, dn, preferred_element_type=jnp.float32)

    # --- epilogue: silu(gate) * up, then fused down-projection ----------------
    @pl.when(k == nk - 1)
    def _():
        g = gate_acc[...]
        # silu(g) = g * sigmoid(g); sigmoid via tanh stays on the EUP slot,
        # avoids the f32 divide and never overflows for very negative g.
        h = (0.5 * g) * (1.0 + jnp.tanh(0.5 * g)) * up_acc[...]
        gate_acc[...] = h  # reuse the gate buffer as the hidden (tm, d_model)

        def w2_dot(slot):
            lhs = gate_acc[...]
            if cast_hidden_to is not None:
                lhs = lhs.astype(cast_hidden_to)
            return lax.dot_general(lhs, w2_buf[slot], dn,
                                   preferred_element_type=jnp.float32)

        if nj == 1:
            wait_w2(0)
            o_ref[...] = w2_dot(0).astype(o_ref.dtype)
        else:
            @pl.loop(0, nj)
            def _(j):
                slot = j & 1
                wait_w2(slot)

                @pl.when(j + 1 < nj)
                def _():
                    start_w2_fetch(pl.multiple_of((j + 1) * tn, _LANE), 1 - slot)

                off = pl.multiple_of(j * tn, _LANE)
                o_ref[:, pl.ds(off, tn)] = w2_dot(slot).astype(o_ref.dtype)


# ---------------------------------------------------------------------------
# Wrapper
# ---------------------------------------------------------------------------
def swiglu_forward(x: jax.Array, w1: jax.Array, w2: jax.Array, w3: jax.Array) -> jax.Array:
    """SwiGLU forward: (silu(x @ w1.T) * (x @ w3.T)) @ w2.T — single fused kernel."""
    d_model, d_ff = w1.shape
    assert w3.shape == (d_model, d_ff), w3.shape
    assert w2.shape == (d_ff, d_model), w2.shape
    assert x.shape[-1] == d_ff, (x.shape, d_ff)

    lead = x.shape[:-1]
    m = int(math.prod(lead)) if lead else 1
    x2d = x.reshape(m, d_ff)

    if w1.dtype != x.dtype:
        w1 = w1.astype(x.dtype)
    if w3.dtype != x.dtype:
        w3 = w3.astype(x.dtype)

    isz = jnp.dtype(x.dtype).itemsize
    w2sz = jnp.dtype(w2.dtype).itemsize

    vmem_limit = _vmem_limit_bytes()
    tm, tk, tn = _select_tiles(m, d_model, d_ff, isz, w2sz,
                               budget=int(vmem_limit * 0.85))

    # v7x has 2 TensorCores sharded over the "parallel" grid axes: make sure the
    # row axis has at least 2 blocks so neither core sits idle.
    if pl.cdiv(m, tm) == 1 and m > _SUBLANE:
        tm = _round_up(pl.cdiv(m, 2), _SUBLANE)

    n_i = pl.cdiv(m, tm)
    nk = pl.cdiv(d_ff, tk)
    nj = d_ff // tn  # tn divides d_ff or tn == d_ff by construction
    ragged_k = (d_ff % tk) != 0
    n_slots = 2 if nj > 1 else 1
    cast_hidden_to = None if jnp.dtype(w2.dtype) == jnp.dtype(jnp.float32) else w2.dtype

    kernel = functools.partial(
        _swiglu_fused_kernel,
        d_ff=d_ff, tk=tk, tn=tn, nj=nj, ragged_k=ragged_k,
        cast_hidden_to=cast_hidden_to)

    out2d = pl.pallas_call(
        kernel,
        out_shape=jax.ShapeDtypeStruct((m, d_ff), x.dtype),
        grid_spec=pltpu.PrefetchScalarGridSpec(
            num_scalar_prefetch=0,
            grid=(n_i, nk),
            in_specs=[
                pl.BlockSpec((tm, tk), lambda i, k: (i, k)),          # x
                pl.BlockSpec((d_model, tk), lambda i, k: (0, k)),     # W1 (gate)
                pl.BlockSpec((d_model, tk), lambda i, k: (0, k)),     # W3 (up)
                pl.BlockSpec(memory_space=pl.ANY),                    # W2 stays in HBM
            ],
            out_specs=pl.BlockSpec((tm, d_ff), lambda i, k: (i, 0)),
            scratch_shapes=[
                pltpu.VMEM((tm, d_model), jnp.float32),               # gate acc / hidden
                pltpu.VMEM((tm, d_model), jnp.float32),               # up acc
                pltpu.VMEM((n_slots, tn, d_model), w2.dtype),         # W2 double buffer
                pltpu.SemaphoreType.DMA((n_slots,)),
            ],
        ),
        compiler_params=pltpu.CompilerParams(
            dimension_semantics=("parallel", "arbitrary"),
            vmem_limit_bytes=vmem_limit,
        ),
        cost_estimate=pl.CostEstimate(
            flops=6 * m * d_model * d_ff + 6 * m * d_model,
            transcendentals=m * d_model,
            bytes_accessed=(2 * m * d_ff * isz
                            + n_i * (2 * d_model * d_ff * isz + d_ff * d_model * w2sz)),
        ),
    )(x2d, w1, w3, w2)

    return out2d.reshape(*lead, d_ff)


# ---------------------------------------------------------------------------
# Test
# ---------------------------------------------------------------------------
if __name__ == "__main__":
    key = jax.random.PRNGKey(0)
    k1, k2, k3, kx = jax.random.split(key, 4)

    batch, seq = 2, 8
    d_model, d_ff = 64, 128  # per the module's forward, x's feature dim is d_ff

    # nn.init.trunc_normal_ defaults: mean=0, std=1, a=-2, b=2
    w1 = jax.random.truncated_normal(k1, -2.0, 2.0, (d_model, d_ff), jnp.float32)
    w2 = jax.random.truncated_normal(k2, -2.0, 2.0, (d_ff, d_model), jnp.float32)
    w3 = jax.random.truncated_normal(k3, -2.0, 2.0, (d_model, d_ff), jnp.float32)
    x = jax.random.normal(kx, (batch, seq, d_ff), dtype=jnp.float32)

    y = jax.block_until_ready(swiglu_forward(x, w1, w2, w3))

    # Pure-JAX reference of the module's forward.
    g = x @ w1.T
    u = x @ w3.T
    y_ref = (g / (1.0 + jnp.exp(-g)) * u) @ w2.T

    assert y.shape == (batch, seq, d_ff), y.shape
    max_err = float(jnp.max(jnp.abs(y - y_ref)))
    assert jnp.allclose(y, y_ref, atol=1e-2, rtol=1e-3), f"mismatch, max_err={max_err}"

    print("KERNEL_OK")
</pallas_src>

<mosaic_0001>
module attributes {stable_mosaic.version = 11 : i64} {
  func.func @_swiglu_fused_kernel(%arg0: i32, %arg1: i32, %arg2: memref<8x128xf32, #tpu.memory_space<vmem>>, %arg3: memref<64x128xf32, #tpu.memory_space<vmem>>, %arg4: memref<64x128xf32, #tpu.memory_space<vmem>>, %arg5: memref<128x64xf32, #tpu.memory_space<any>>, %arg6: memref<8x128xf32, #tpu.memory_space<vmem>>, %arg7: memref<8x64xf32, #tpu.memory_space<vmem>>, %arg8: memref<8x64xf32, #tpu.memory_space<vmem>>, %arg9: memref<1x128x64xf32, #tpu.memory_space<vmem>>, %arg10: memref<1x!tpu.dma_semaphore, #tpu.memory_space<semaphore_mem>>) attributes {dimension_semantics = [#tpu.dimension_semantics<parallel>, #tpu.dimension_semantics<arbitrary>], iteration_bounds = array<i64: 2, 1>, scalar_prefetch = 0 : i64, scratch_operands = 4 : i64, tpu.core_type = #tpu.core_type<tc>, window_params = [{transform_indices = @transform_0, window_bounds = array<i64: 8, 128>}, {transform_indices = @transform_1, window_bounds = array<i64: 64, 128>}, {transform_indices = @transform_2, window_bounds = array<i64: 64, 128>}, {}, {transform_indices = @transform_4, window_bounds = array<i64: 8, 128>}]} {
    %c0_i32 = arith.constant 0 : i32
    %0 = arith.cmpi eq, %arg1, %c0_i32 : i32
    %1 = arith.extui %0 : i1 to i32
    %c0_i32_0 = arith.constant 0 : i32
    %2 = arith.cmpi ne, %1, %c0_i32_0 : i32
    scf.if %2 {
      %cst_17 = arith.constant 0.000000e+00 : f32
      %17 = vector.broadcast %cst_17 : f32 to vector<8x64xf32>
      %c0_18 = arith.constant 0 : index
      %c0_19 = arith.constant 0 : index
      %18 = vector.load %arg7[%c0_18, %c0_19] : memref<8x64xf32, #tpu.memory_space<vmem>>, vector<8x64xf32>
      tpu.vector_store %arg7[%c0_18, %c0_19], %17 {strides = array<i32>} : memref<8x64xf32, #tpu.memory_space<vmem>>, vector<8x64xf32>,
      %cst_20 = arith.constant 0.000000e+00 : f32
      %19 = vector.broadcast %cst_20 : f32 to vector<8x64xf32>
      %c0_21 = arith.constant 0 : index
      %c0_22 = arith.constant 0 : index
      %20 = vector.load %arg8[%c0_21, %c0_22] : memref<8x64xf32, #tpu.memory_space<vmem>>, vector<8x64xf32>
      tpu.vector_store %arg8[%c0_21, %c0_22], %19 {strides = array<i32>} : memref<8x64xf32, #tpu.memory_space<vmem>>, vector<8x64xf32>,
      %c0_i32_23 = arith.constant 0 : i32
      %c0_i32_24 = arith.constant 0 : i32
      %c0_i32_25 = arith.constant 0 : i32
      %c0_i32_26 = arith.constant 0 : i32
      %21 = tpu.memref_slice %arg5[%c0_i32_25, %c0_i32_26] : memref<128x64xf32, #tpu.memory_space<any>> -> memref<128x64xf32, #tpu.memory_space<any>>
      %c0_i32_27 = arith.constant 0 : i32
      %c0_i32_28 = arith.constant 0 : i32
      %22 = tpu.memref_slice %arg9[%c0_i32_23, %c0_i32_27, %c0_i32_28] : memref<1x128x64xf32, #tpu.memory_space<vmem>> -> memref<1x128x64xf32, #tpu.memory_space<vmem>>
      %23 = tpu.memref_squeeze %22 : memref<1x128x64xf32, #tpu.memory_space<vmem>> -> memref<128x64xf32, #tpu.memory_space<vmem>>
      %24 = tpu.memref_slice %arg10[%c0_i32_24] : memref<1x!tpu.dma_semaphore, #tpu.memory_space<semaphore_mem>> -> memref<1x!tpu.dma_semaphore, #tpu.memory_space<semaphore_mem>>
      %25 = tpu.memref_squeeze %24 : memref<1x!tpu.dma_semaphore, #tpu.memory_space<semaphore_mem>> -> memref<!tpu.dma_semaphore, #tpu.memory_space<semaphore_mem>>
      tpu.enqueue_dma source(%21 : memref<128x64xf32, #tpu.memory_space<any>>) target(%23 : memref<128x64xf32, #tpu.memory_space<vmem>>) target_semaphore(%25 : memref<!tpu.dma_semaphore, #tpu.memory_space<semaphore_mem>>)
    } else {
    }
    %c0 = arith.constant 0 : index
    %c0_1 = arith.constant 0 : index
    %3 = vector.load %arg2[%c0, %c0_1] : memref<8x128xf32, #tpu.memory_space<vmem>>, vector<8x128xf32>
    %c0_2 = arith.constant 0 : index
    %c0_3 = arith.constant 0 : index
    %4 = vector.load %arg3[%c0_2, %c0_3] : memref<64x128xf32, #tpu.memory_space<vmem>>, vector<64x128xf32>
    %c0_4 = arith.constant 0 : index
    %c0_5 = arith.constant 0 : index
    %5 = vector.load %arg4[%c0_4, %c0_5] : memref<64x128xf32, #tpu.memory_space<vmem>>, vector<64x128xf32>
    %c0_6 = arith.constant 0 : index
    %c0_7 = arith.constant 0 : index
    %6 = vector.load %arg7[%c0_6, %c0_7] : memref<8x64xf32, #tpu.memory_space<vmem>>, vector<8x64xf32>
    %cst = arith.constant dense<0.000000e+00> : vector<8x64xf32>
    %7 = tpu.matmul %3, %4, %cst {dimension_numbers = #tpu.dot_dimension_numbers<[1], [1], [0], [0], [0, 0, 1, 0], [], []>} : vector<8x128xf32>, vector<64x128xf32>, vector<8x64xf32> -> vector<8x64xf32>
    %8 = arith.addf %6, %7 : vector<8x64xf32>
    %c0_8 = arith.constant 0 : index
    %c0_9 = arith.constant 0 : index
    %9 = vector.load %arg7[%c0_8, %c0_9] : memref<8x64xf32, #tpu.memory_space<vmem>>, vector<8x64xf32>
    tpu.vector_store %arg7[%c0_8, %c0_9], %8 {strides = array<i32>} : memref<8x64xf32, #tpu.memory_space<vmem>>, vector<8x64xf32>,
    %c0_10 = arith.constant 0 : index
    %c0_11 = arith.constant 0 : index
    %10 = vector.load %arg8[%c0_10, %c0_11] : memref<8x64xf32, #tpu.memory_space<vmem>>, vector<8x64xf32>
    %cst_12 = arith.constant dense<0.000000e+00> : vector<8x64xf32>
    %11 = tpu.matmul %3, %5, %cst_12 {dimension_numbers = #tpu.dot_dimension_numbers<[1], [1], [0], [0], [0, 0, 1, 0], [], []>} : vector<8x128xf32>, vector<64x128xf32>, vector<8x64xf32> -> vector<8x64xf32>
    %12 = arith.addf %10, %11 : vector<8x64xf32>
    %c0_13 = arith.constant 0 : index
    %c0_14 = arith.constant 0 : index
    %13 = vector.load %arg8[%c0_13, %c0_14] : memref<8x64xf32, #tpu.memory_space<vmem>>, vector<8x64xf32>
    tpu.vector_store %arg8[%c0_13, %c0_14], %12 {strides = array<i32>} : memref<8x64xf32, #tpu.memory_space<vmem>>, vector<8x64xf32>,
    %c0_i32_15 = arith.constant 0 : i32
    %14 = arith.cmpi eq, %arg1, %c0_i32_15 : i32
    %15 = arith.extui %14 : i1 to i32
    %c0_i32_16 = arith.constant 0 : i32
    %16 = arith.cmpi ne, %15, %c0_i32_16 : i32
    scf.if %16 {
      %c0_17 = arith.constant 0 : index
      %c0_18 = arith.constant 0 : index
      %17 = vector.load %arg7[%c0_17, %c0_18] : memref<8x64xf32, #tpu.memory_space<vmem>>, vector<8x64xf32>
      %cst_19 = arith.constant 5.000000e-01 : f32
      %18 = vector.broadcast %cst_19 : f32 to vector<8x64xf32>
      %19 = arith.mulf %18, %17 : vector<8x64xf32>
      %cst_20 = arith.constant 5.000000e-01 : f32
      %20 = vector.broadcast %cst_20 : f32 to vector<8x64xf32>
      %21 = arith.mulf %20, %17 : vector<8x64xf32>
      %22 = math.tanh %21 : vector<8x64xf32>
      %cst_21 = arith.constant 1.000000e+00 : f32
      %23 = vector.broadcast %cst_21 : f32 to vector<8x64xf32>
      %24 = arith.addf %23, %22 : vector<8x64xf32>
      %25 = arith.mulf %19, %24 : vector<8x64xf32>
      %c0_22 = arith.constant 0 : index
      %c0_23 = arith.constant 0 : index
      %26 = vector.load %arg8[%c0_22, %c0_23] : memref<8x64xf32, #tpu.memory_space<vmem>>, vector<8x64xf32>
      %27 = arith.mulf %25, %26 : vector<8x64xf32>
      %c0_24 = arith.constant 0 : index
      %c0_25 = arith.constant 0 : index
      %28 = vector.load %arg7[%c0_24, %c0_25] : memref<8x64xf32, #tpu.memory_space<vmem>>, vector<8x64xf32>
      tpu.vector_store %arg7[%c0_24, %c0_25], %27 {strides = array<i32>} : memref<8x64xf32, #tpu.memory_space<vmem>>, vector<8x64xf32>,
      %c0_i32_26 = arith.constant 0 : i32
      %c0_i32_27 = arith.constant 0 : i32
      %c0_i32_28 = arith.constant 0 : i32
      %c0_i32_29 = arith.constant 0 : i32
      %29 = tpu.memref_slice %arg5[%c0_i32_28, %c0_i32_29] : memref<128x64xf32, #tpu.memory_space<any>> -> memref<128x64xf32, #tpu.memory_space<any>>
      %c0_i32_30 = arith.constant 0 : i32
      %c0_i32_31 = arith.constant 0 : i32
      %30 = tpu.memref_slice %arg9[%c0_i32_26, %c0_i32_30, %c0_i32_31] : memref<1x128x64xf32, #tpu.memory_space<vmem>> -> memref<1x128x64xf32, #tpu.memory_space<vmem>>
      %31 = tpu.memref_squeeze %30 : memref<1x128x64xf32, #tpu.memory_space<vmem>> -> memref<128x64xf32, #tpu.memory_space<vmem>>
      %32 = tpu.memref_slice %arg10[%c0_i32_27] : memref<1x!tpu.dma_semaphore, #tpu.memory_space<semaphore_mem>> -> memref<1x!tpu.dma_semaphore, #tpu.memory_space<semaphore_mem>>
      %33 = tpu.memref_squeeze %32 : memref<1x!tpu.dma_semaphore, #tpu.memory_space<semaphore_mem>> -> memref<!tpu.dma_semaphore, #tpu.memory_space<semaphore_mem>>
      tpu.wait_dma2 semaphore(%33 : memref<!tpu.dma_semaphore, #tpu.memory_space<semaphore_mem>>) src(%29 : memref<128x64xf32, #tpu.memory_space<any>>) dst(%31 : memref<128x64xf32, #tpu.memory_space<vmem>>)
      %c0_32 = arith.constant 0 : index
      %c0_33 = arith.constant 0 : index
      %34 = vector.load %arg7[%c0_32, %c0_33] : memref<8x64xf32, #tpu.memory_space<vmem>>, vector<8x64xf32>
      %c0_34 = arith.constant 0 : index
      %c0_35 = arith.constant 0 : index
      %c0_36 = arith.constant 0 : index
      %35 = vector.load %arg9[%c0_34, %c0_35, %c0_36] : memref<1x128x64xf32, #tpu.memory_space<vmem>>, vector<1x128x64xf32>
      %36 = vector.shape_cast %35 : vector<1x128x64xf32> to vector<128x64xf32>
      %cst_37 = arith.constant dense<0.000000e+00> : vector<8x128xf32>
      %37 = tpu.matmul %34, %36, %cst_37 {dimension_numbers = #tpu.dot_dimension_numbers<[1], [1], [0], [0], [0, 0, 1, 0], [], []>} : vector<8x64xf32>, vector<128x64xf32>, vector<8x128xf32> -> vector<8x128xf32>
      %c0_38 = arith.constant 0 : index
      %c0_39 = arith.constant 0 : index
      %38 = vector.load %arg6[%c0_38, %c0_39] : memref<8x128xf32, #tpu.memory_space<vmem>>, vector<8x128xf32>
      tpu.vector_store %arg6[%c0_38, %c0_39], %37 {strides = array<i32>} : memref<8x128xf32, #tpu.memory_space<vmem>>, vector<8x128xf32>,
    } else {
    }
    return
  }
  func.func @transform_0(%arg0: i32, %arg1: i32) -> (i32, i32) {
    %c0_i32 = arith.constant 0 : i32
    return %arg0, %arg1 : i32, i32
  }
  func.func @transform_1(%arg0: i32, %arg1: i32) -> (i32, i32) {
    %c0_i32 = arith.constant 0 : i32
    %c0_i32_0 = arith.constant 0 : i32
    return %c0_i32, %arg1 : i32, i32
  }
  func.func @transform_2(%arg0: i32, %arg1: i32) -> (i32, i32) {
    %c0_i32 = arith.constant 0 : i32
    %c0_i32_0 = arith.constant 0 : i32
    return %c0_i32, %arg1 : i32, i32
  }
  func.func @transform_4(%arg0: i32, %arg1: i32) -> (i32, i32) {
    %c0_i32 = arith.constant 0 : i32
    %c0_i32_0 = arith.constant 0 : i32
    return %arg0, %c0_i32 : i32, i32
  }
}

</mosaic_0001>

<llo_original>
// kernel: tpu_custom_call.1
$region0: #{tpu_custom_call.1}
  #allocation0 [shape = 'u32[]', space=smem, size = 0x4, offset = 0x4, fixed_abs, tag = 'smem constant byte address 0x4 - core index']
  #allocation1 [shape = 'u32[144,128]{1,0:T(1,128)}', space=vmem, size = 0x12000, scoped, tag = 'internal scratch']
  #allocation2 [shape = 'f32[8,64]{1,0:T(8,128)}', space=vmem, size = 0x1000, scoped, tag = 'scratch operand']
  #allocation3 [shape = 'f32[8,64]{1,0:T(8,128)}', space=vmem, size = 0x1000, scoped, tag = 'scratch operand']
  #allocation4 [shape = 'f32[1,128,64]{2,1,0:T(8,128)}', space=vmem, size = 0x10000, scoped, tag = 'scratch operand']
  #allocation5 [shape = 's32[1]{0}', space=sflag, size = 0x4, scoped, tag = 'scratch operand']
  #allocation8 [shape = 's32[]', space=sflag, size = 0x4, offset = 0, fixed_abs, tag = 'sflag constant byte address 0x0 - dummy sync flag']
  %s0 = inlined_call_operand.vmem [shape: f32[16,128], index: 0, kind: input, shape index: {}]
  %s1 = inlined_call_operand.vmem [shape: f32[64,128], index: 1, kind: input, shape index: {}]
  %s2 = inlined_call_operand.vmem [shape: f32[64,128], index: 2, kind: input, shape index: {}]
  %s3 = inlined_call_operand.vmem [shape: f32[128,64], index: 3, kind: input, shape index: {}]
  %s4 = inlined_call_operand.hbm [shape: f32[16,128], index: 4, kind: output, shape index: {}]
  %s5 = sld [smem:[#allocation0]]
  $region87: #{tpu_custom_call.1} parent=0
    _
  %s7 = ssub.s32 1, %s5
  %s8 = scalar_select 0, %s7, %s5
  $region1: #{tpu_custom_call.1} parent=0
    #allocation6 [shape = 'u8[8192]{0}', space=vmem, size = 0x2000, scoped, tag = 'output window, operand 0']
    #allocation7 [shape = 's32[2]{0}', space=sflag, size = 0x8, scoped, tag = 'scoped memory for tpu_custom_call.1']
    %9 = vsyncpa [#allocation7], 0
    %s10 = scalar_lea.sflag [#allocation7], 1
    %11 = vsyncpa %s10, 0
    loop: start=0, step=1, limit=4
    $region2: #{tpu_custom_call.1} parent=1 // loop_pre_header
      _
    $region3: #{tpu_custom_call.1} parent=1 // loop_header
      %s13 = sphi 0, %s17
      %p14 = scmp.ge.s32.totalorder %s13, 4
      %s20 = sphi 0, %s32
      %s21 = sphi 0, %s28
      %s22 = sphi 0, %s20
      %s23 = sphi 0, %s21
      %s24 = sphi 0, %s22
      %s25 = sphi 0, %s23
      %s37 = sphi 0, %s39
      %s40 = sphi 0, %s37
      %s41 = sphi 0, %s40
      %s57 = sphi 0, %s41
      %s63 = sphi 0, %s65
      %s66 = sphi 0, %s63
      %s67 = sphi 0, %s66
      %s83 = sphi 0, %s67
      %s89 = sphi 0, %s91
      %s92 = sphi 0, %s89
      %s93 = sphi 0, %s92
      %s109 = sphi 0, %s93
      %s115 = sphi 0, %s117
      %s118 = sphi 0, %s115
      %s119 = sphi 0, %s118
      %s135 = sphi 0, %s119
    $region4: #{tpu_custom_call.1} parent=1 // loop_header_branch
      %16 = sbr.rel (%p14) target = $region8
    $region5: #{tpu_custom_call.1} parent=1 // loop_body
      %s18 = ssub.s32 %s13, 1
      %s19 = ssub.s32 %s13, 2
      %s26 = sadd.s32 1, %s21
      %p27 = scmp.ge.s32.totalorder %s26, 1
      %s28 = scalar_select %p27, 0, %s26
      %s29 = sadd.s32 1, %s20
      %s30 = scalar_select %p27, %s29, %s20
      %p31 = scmp.ge.s32.totalorder %s30, 2
      %s32 = scalar_select %p31, 0, %s30
      %s33 = ssub.s32 %s20, %s32
      %s34 = ssub.s32 %s21, %s28
      %s35 = sor.u32 %s33, %s34
      %p36 = scmp.eq.s32.totalorder %s35, 0
      %s38 = sadd.s32 %s37, 1
      %s39 = scalar_select %p36, %s37, %s38
      %p42 = pneg %p36
      %p43 = scmp.eq.s32.totalorder %s13, 1
      %p44 = por %p42, %p43
      %p45 = scmp.ne.s32.totalorder %s37, %s40
      %p46 = scmp.eq.s32.totalorder %s13, 0
      %p47 = por %p45, %p46
      %p48 = scmp.ne.s32.totalorder %s37, %s40
      %p49 = scmp.eq.s32.totalorder %s18, 1
      %p50 = por %p48, %p49
      %p51 = scmp.ne.s32.totalorder %s40, %s41
      %p52 = scmp.eq.s32.totalorder %s18, 0
      %p53 = por %p51, %p52
      %p54 = scmp.ne.s32.totalorder %s40, %s41
      %p55 = scmp.eq.s32.totalorder %s19, 1
      %p56 = por %p54, %p55
      %p58 = scmp.ne.s32.totalorder %s41, %s57
      %p59 = scmp.eq.s32.totalorder %s19, 0
      %p60 = por %p58, %p59
      %s61 = ssub.s32 %s21, %s28
      %p62 = scmp.eq.s32.totalorder %s61, 0
      %s64 = sadd.s32 %s63, 1
      %s65 = scalar_select %p62, %s63, %s64
      %p68 = pneg %p62
      %p69 = scmp.eq.s32.totalorder %s13, 1
      %p70 = por %p68, %p69
      %p71 = scmp.ne.s32.totalorder %s63, %s66
      %p72 = scmp.eq.s32.totalorder %s13, 0
      %p73 = por %p71, %p72
      %p74 = scmp.ne.s32.totalorder %s63, %s66
      %p75 = scmp.eq.s32.totalorder %s18, 1
      %p76 = por %p74, %p75
      %p77 = scmp.ne.s32.totalorder %s66, %s67
      %p78 = scmp.eq.s32.totalorder %s18, 0
      %p79 = por %p77, %p78
      %p80 = scmp.ne.s32.totalorder %s66, %s67
      %p81 = scmp.eq.s32.totalorder %s19, 1
      %p82 = por %p80, %p81
      %p84 = scmp.ne.s32.totalorder %s67, %s83
      %p85 = scmp.eq.s32.totalorder %s19, 0
      %p86 = por %p84, %p85
      %s87 = ssub.s32 %s21, %s28
      %p88 = scmp.eq.s32.totalorder %s87, 0
      %s90 = sadd.s32 %s89, 1
      %s91 = scalar_select %p88, %s89, %s90
      %p94 = pneg %p88
      %p95 = scmp.eq.s32.totalorder %s13, 1
      %p96 = por %p94, %p95
      %p97 = scmp.ne.s32.totalorder %s89, %s92
      %p98 = scmp.eq.s32.totalorder %s13, 0
      %p99 = por %p97, %p98
      %p100 = scmp.ne.s32.totalorder %s89, %s92
      %p101 = scmp.eq.s32.totalorder %s18, 1
      %p102 = por %p100, %p101
      %p103 = scmp.ne.s32.totalorder %s92, %s93
      %p104 = scmp.eq.s32.totalorder %s18, 0
      %p105 = por %p103, %p104
      %p106 = scmp.ne.s32.totalorder %s92, %s93
      %p107 = scmp.eq.s32.totalorder %s19, 1
      %p108 = por %p106, %p107
      %p110 = scmp.ne.s32.totalorder %s93, %s109
      %p111 = scmp.eq.s32.totalorder %s19, 0
      %p112 = por %p110, %p111
      %s113 = ssub.s32 %s20, %s32
      %p114 = scmp.eq.s32.totalorder %s113, 0
      %s116 = sadd.s32 %s115, 1
      %s117 = scalar_select %p114, %s115, %s116
      %p120 = pneg %p114
      %p121 = scmp.eq.s32.totalorder %s13, 1
      %p122 = por %p120, %p121
      %p123 = scmp.ne.s32.totalorder %s115, %s118
      %p124 = scmp.eq.s32.totalorder %s13, 0
      %p125 = por %p123, %p124
      %p126 = scmp.ne.s32.totalorder %s115, %s118
      %p127 = scmp.eq.s32.totalorder %s18, 1
      %p128 = por %p126, %p127
      %p129 = scmp.ne.s32.totalorder %s118, %s119
      %p130 = scmp.eq.s32.totalorder %s18, 0
      %p131 = por %p129, %p130
      %p132 = scmp.ne.s32.totalorder %s118, %s119
      %p133 = scmp.eq.s32.totalorder %s19, 1
      %p134 = por %p132, %p133
      %p136 = scmp.ne.s32.totalorder %s119, %s135
      %p137 = scmp.eq.s32.totalorder %s19, 0
      %p138 = por %p136, %p137
      %p139 = scmp.le.s32.totalorder 1, %s13
      %p140 = scmp.lt.s32.totalorder %s13, 3
      %p141 = pnand %p139, %p140
      %p142 = pneg %p141
      // Predicated region
      $region9: #{tpu_custom_call.1} parent=5 // pred_check
        _
      $region10: #{tpu_custom_call.1} parent=5 // pred_check_branch
        %144 = sbr.rel (%p141) target = $region12
      $region11: #{tpu_custom_call.1} parent=5 // pred_region
        %s145 = ssub.s32 %s13, 1
        // Predicated region
        $region13: #{tpu_custom_call.1} parent=11 // pred_check
          %p146 = pneg %p79
        $region14: #{tpu_custom_call.1} parent=11 // pred_check_branch
          %148 = sbr.rel (%p146) target = $region16
        $region15: #{tpu_custom_call.1} parent=11 // pred_region
          %p149 = scmp.lt.s32.totalorder %s23, 0
          %s150 = scalar_select %p149, %s23, 0
          %s151 = smul.addr %s150, 8
          %s152 = scalar_lea.vmem %s1, %s151
        $region16: #{tpu_custom_call.1} parent=11 // pred_fallthru
          _
        // Predicated region
        $region17: #{tpu_custom_call.1} parent=11 // pred_check
          %p153 = pneg %p105
        $region18: #{tpu_custom_call.1} parent=11 // pred_check_branch
          %155 = sbr.rel (%p153) target = $region20
        $region19: #{tpu_custom_call.1} parent=11 // pred_region
          %p156 = scmp.lt.s32.totalorder %s23, 0
          %s157 = scalar_select %p156, %s23, 0
          %s158 = smul.addr %s157, 8
          %s159 = scalar_lea.vmem %s2, %s158
        $region20: #{tpu_custom_call.1} parent=11 // pred_fallthru
          _
      $region12: #{tpu_custom_call.1} parent=5 // pred_fallthru
        _
      %p160 = scmp.lt.s32.totalorder %s13, 2
      // Predicated region
      $region21: #{tpu_custom_call.1} parent=5 // pred_check
        %p161 = pneg %p160
      $region22: #{tpu_custom_call.1} parent=5 // pred_check_branch
        %163 = sbr.rel (%p161) target = $region24
      $region23: #{tpu_custom_call.1} parent=5 // pred_region
        // Predicated region
        $region25: #{tpu_custom_call.1} parent=23 // pred_check
          %p164 = pneg %p47
        $region26: #{tpu_custom_call.1} parent=23 // pred_check_branch
          %166 = sbr.rel (%p164) target = $region28
        $region27: #{tpu_custom_call.1} parent=23 // pred_region
          %p167 = scmp.lt.s32.totalorder %s20, 1
          %s168 = scalar_select %p167, %s20, 1
          %p169 = scmp.lt.s32.totalorder %s21, 0
          %s170 = scalar_select %p169, %s21, 0
          %s171 = sadd.s32 %s170, %s168
          %s172 = smul.addr %s171, 8
          %s173 = scalar_lea.vmem %s0, %s172
        $region28: #{tpu_custom_call.1} parent=23 // pred_fallthru
          _
      $region24: #{tpu_custom_call.1} parent=5 // pred_fallthru
        _
      %p174 = scmp.le.s32.totalorder 1, %s13
      %p175 = scmp.lt.s32.totalorder %s13, 3
      %p176 = pnand %p174, %p175
      %p177 = pneg %p176
      // Predicated region
      $region29: #{tpu_custom_call.1} parent=5 // pred_check
        _
      $region30: #{tpu_custom_call.1} parent=5 // pred_check_branch
        %179 = sbr.rel (%p176) target = $region32
      $region31: #{tpu_custom_call.1} parent=5 // pred_region
        %s180 = ssub.s32 %s13, 1
        %p181 = scmp.lt.s32.totalorder %s22, 1
        %s182 = scalar_select %p181, %s22, 1
        %p183 = scmp.lt.s32.totalorder %s23, 0
        %s184 = scalar_select %p183, %s23, 0
        %s185 = sadd.s32 %s184, %s182
        %s186 = smul.addr %s185, 8
        %s187 = scalar_lea.vmem %s0, %s186
        %p188 = pneg %p53
        %p189 = pneg %p50
        %p190 = scmp.lt.s32.totalorder %s23, 0
        %s191 = scalar_select %p190, %s23, 0
        %s192 = smul.addr %s191, 8
        %s193 = scalar_lea.vmem %s1, %s192
        %p194 = pneg %p79
        %p195 = pneg %p76
        %p196 = scmp.lt.s32.totalorder %s23, 0
        %s197 = scalar_select %p196, %s23, 0
        %s198 = smul.addr %s197, 8
        %s199 = scalar_lea.vmem %s2, %s198
        %p200 = pneg %p105
        %p201 = pneg %p102
        %p202 = pneg %p131
        %p203 = pneg %p128
        %s204 = sand.u32 %s118, 1
        %s205 = scalar_lea.sflag [#allocation7], %s204
        %s206 = sand.u32 %s118, 1
        %s207 = smul.addr %s206, 8
        %s208 = scalar_lea.vmem [#allocation6], %s207
        %p209 = scmp.lt.s32.totalorder %s22, 1
        %s210 = scalar_select %p209, %s22, 1
        %p211 = scmp.lt.s32.totalorder %s23, 0
        %s212 = scalar_select %p211, %s23, 0
        %s213 = sadd.s32 %s212, %s210
        %s214 = smul.addr %s213, 8
        %s215 = scalar_lea.vmem %s0, %s214
        %p216 = scmp.lt.s32.totalorder %s23, 0
        %s217 = scalar_select %p216, %s23, 0
        %s218 = smul.addr %s217, 8
        %s219 = scalar_lea.vmem %s1, %s218
        %p220 = scmp.lt.s32.totalorder %s23, 0
        %s221 = scalar_select %p220, %s23, 0
        %s222 = smul.addr %s221, 8
        %s223 = scalar_lea.vmem %s2, %s222
        %p224 = scmp.eq.s32.totalorder %s23, 0
        // Predicated region
        $region33: #{tpu_custom_call.1} parent=31 // pred_check
          %p225 = pneg %p224
        $region34: #{tpu_custom_call.1} parent=31 // pred_check_branch
          %227 = sbr.rel (%p225) target = $region36
        $region35: #{tpu_custom_call.1} parent=31 // pred_region
          %vm228 = vcmask 523264
          %229 = vst.msk [vmem:[#allocation2] sm:$0xff] %vm228, 0.0
          %230 = vst.msk [vmem:[#allocation3] sm:$0xff] %vm228, 0.0
          %p232 = scmp.lt.u32.totalorder 128, 8
          %p233 = pneg %p232
          // Predicated region
          $region37: #{tpu_custom_call.1} parent=35 // pred_check
            _
          $region38: #{tpu_custom_call.1} parent=35 // pred_check_branch
            %235 = sbr.rel (%p232) target = $region40
          $region39: #{tpu_custom_call.1} parent=35 // pred_region
            %s251 = sand.u32 128, 7
            %p252 = scmp.eq.s32.totalorder %s251, 0
            // Predicated region
            $region52: #{tpu_custom_call.1} parent=39 // pred_check
              %p253 = pneg %p252
            $region53: #{tpu_custom_call.1} parent=39 // pred_check_branch
              %255 = sbr.rel (%p253) target = $region55
            $region54: #{tpu_custom_call.1} parent=39 // pred_region
              loop: start=0, step=1, limit=1
              $region56: #{tpu_custom_call.1} parent=54 // loop_pre_header
                _
              $region57: #{tpu_custom_call.1} parent=54 // loop_header
                %s257 = sphi 0, %s261
                %p258 = scmp.ge.s32.totalorder %s257, 1
                %s262 = sphi %s3, %s3
                %s263 = sphi [#allocation4], [#allocation4]
              $region58: #{tpu_custom_call.1} parent=54 // loop_header_branch
                %260 = sbr.rel (%p258) target = $region62
              $region59: #{tpu_custom_call.1} parent=54 // loop_body
                %v264 = vld [vmem:[%s262] sm:$0xff]
                %265 = vst [vmem:[%s263] sm:$0xff] %v264
                %v266 = vld [vmem:[%s262 + $0x8] sm:$0xff]
                %267 = vst [vmem:[%s263 + $0x8] sm:$0xff] %v266
                %v268 = vld [vmem:[%s262 + $0x10] sm:$0xff]
                %269 = vst [vmem:[%s263 + $0x10] sm:$0xff] %v268
                %v270 = vld [vmem:[%s262 + $0x18] sm:$0xff]
                %271 = vst [vmem:[%s263 + $0x18] sm:$0xff] %v270
                %v272 = vld [vmem:[%s262 + $0x20] sm:$0xff]
                %273 = vst [vmem:[%s263 + $0x20] sm:$0xff] %v272
                %v274 = vld [vmem:[%s262 + $0x28] sm:$0xff]
                %275 = vst [vmem:[%s263 + $0x28] sm:$0xff] %v274
                %v276 = vld [vmem:[%s262 + $0x30] sm:$0xff]
                %277 = vst [vmem:[%s263 + $0x30] sm:$0xff] %v276
                %v278 = vld [vmem:[%s262 + $0x38] sm:$0xff]
                %279 = vst [vmem:[%s263 + $0x38] sm:$0xff] %v278
                %v280 = vld [vmem:[%s262 + $0x40] sm:$0xff]
                %281 = vst [vmem:[%s263 + $0x40] sm:$0xff] %v280
                %v282 = vld [vmem:[%s262 + $0x48] sm:$0xff]
                %283 = vst [vmem:[%s263 + $0x48] sm:$0xff] %v282
                %v284 = vld [vmem:[%s262 + $0x50] sm:$0xff]
                %285 = vst [vmem:[%s263 + $0x50] sm:$0xff] %v284
                %v286 = vld [vmem:[%s262 + $0x58] sm:$0xff]
                %287 = vst [vmem:[%s263 + $0x58] sm:$0xff] %v286
                %v288 = vld [vmem:[%s262 + $0x60] sm:$0xff]
                %289 = vst [vmem:[%s263 + $0x60] sm:$0xff] %v288
                %v290 = vld [vmem:[%s262 + $0x68] sm:$0xff]
                %291 = vst [vmem:[%s263 + $0x68] sm:$0xff] %v290
                %v292 = vld [vmem:[%s262 + $0x70] sm:$0xff]
                %293 = vst [vmem:[%s263 + $0x70] sm:$0xff] %v292
                %v294 = vld [vmem:[%s262 + $0x78] sm:$0xff]
                %295 = vst [vmem:[%s263 + $0x78] sm:$0xff] %v294
              $region60: #{tpu_custom_call.1} parent=54 // loop_footer
                %s261 = sadd.s32 1, %s257
              $region61: #{tpu_custom_call.1} parent=54 // loop_footer_branch
                %256 = sbr.rel target = $region57
              $region62: #{tpu_custom_call.1} parent=54 // loop_exit
                _
            $region55: #{tpu_custom_call.1} parent=39 // pred_fallthru
              _
            %p296 = pneg %p252
            // Predicated region
            $region63: #{tpu_custom_call.1} parent=39 // pred_check
              _
            $region64: #{tpu_custom_call.1} parent=39 // pred_check_branch
              %298 = sbr.rel (%p252) target = $region66
            $region65: #{tpu_custom_call.1} parent=39 // pred_region
              %s299 = sand.u32 128, 7
            $region66: #{tpu_custom_call.1} parent=39 // pred_fallthru
              _
          $region40: #{tpu_custom_call.1} parent=35 // pred_fallthru
            _
          // Predicated region
          $region41: #{tpu_custom_call.1} parent=35 // pred_check
            %p236 = pneg %p232
          $region42: #{tpu_custom_call.1} parent=35 // pred_check_branch
            %238 = sbr.rel (%p236) target = $region44
          $region43: #{tpu_custom_call.1} parent=35 // pred_region
            %s239 = sshll.u32 1, 128
            %s240 = ssub.s32 %s239, 1
            loop: start=0, step=1, limit=1
            $region45: #{tpu_custom_call.1} parent=43 // loop_pre_header
              _
            $region46: #{tpu_custom_call.1} parent=43 // loop_header
              %s242 = sphi 0, %s246
              %p243 = scmp.ge.s32.totalorder %s242, 1
              %s247 = sphi %s3, %s3
              %s248 = sphi [#allocation4], [#allocation4]
            $region47: #{tpu_custom_call.1} parent=43 // loop_header_branch
              %245 = sbr.rel (%p243) target = $region51
            $region48: #{tpu_custom_call.1} parent=43 // loop_body
              %v249 = vld [vmem:[%s247] sm:%s240]
              %250 = vst [vmem:[%s248] sm:%s240] %v249
            $region49: #{tpu_custom_call.1} parent=43 // loop_footer
              %s246 = sadd.s32 1, %s242
            $region50: #{tpu_custom_call.1} parent=43 // loop_footer_branch
              %241 = sbr.rel target = $region46
            $region51: #{tpu_custom_call.1} parent=43 // loop_exit
              _
          $region44: #{tpu_custom_call.1} parent=35 // pred_fallthru
            _
          // Predicated region
          $region67: #{tpu_custom_call.1} parent=35 // pred_check
            _
          $region68: #{tpu_custom_call.1} parent=35 // pred_check_branch
            %302 = sbr.rel (0) target = $region70
          $region69: #{tpu_custom_call.1} parent=35 // pred_region
            %303 = vsyncadd [#allocation5], 2048
          $region70: #{tpu_custom_call.1} parent=35 // pred_fallthru
            _
        $region36: #{tpu_custom_call.1} parent=31 // pred_fallthru
          _
        %v304 = vld [vmem:[%s215] sm:$0xff]
        %v305 = vld [vmem:[%s219] sm:$0xff]
        %v306 = vld [vmem:[%s219 + $0x8] sm:$0xff]
        %v307 = vld [vmem:[%s219 + $0x10] sm:$0xff]
        %v308 = vld [vmem:[%s219 + $0x18] sm:$0xff]
        %v309 = vld [vmem:[%s219 + $0x20] sm:$0xff]
        %v310 = vld [vmem:[%s219 + $0x28] sm:$0xff]
        %v311 = vld [vmem:[%s219 + $0x30] sm:$0xff]
        %v312 = vld [vmem:[%s219 + $0x38] sm:$0xff]
        %v313 = vld [vmem:[%s223] sm:$0xff]
        %v314 = vld [vmem:[%s223 + $0x8] sm:$0xff]
        %v315 = vld [vmem:[%s223 + $0x10] sm:$0xff]
        %v316 = vld [vmem:[%s223 + $0x18] sm:$0xff]
        %v317 = vld [vmem:[%s223 + $0x20] sm:$0xff]
        %v318 = vld [vmem:[%s223 + $0x28] sm:$0xff]
        %v319 = vld [vmem:[%s223 + $0x30] sm:$0xff]
        %v320 = vld [vmem:[%s223 + $0x38] sm:$0xff]
        %v321 = vld [vmem:[#allocation2] sm:$0xff]
        %322 = vmatprep.subr.mxu0 0.0
        %323 = vmatpush1.xpose.msra.mxu0 0.0
        %324 = vmatprep.subr.mxu0 0.0
        %325 = vmatpush1.xpose.msra.mxu0 0.0
        %326 = vmatprep.subr.mxu0 0.0
        %327 = vmatpush1.xpose.msra.mxu0 0.0
        %328 = vmatprep.subr.mxu0 0.0
        %329 = vmatpush1.xpose.msra.mxu0 0.0
        %330 = vmatprep.subr.mxu0 0.0
        %331 = vmatpush1.xpose.msra.mxu0 0.0
        %332 = vmatprep.subr.mxu0 0.0
        %333 = vmatpush1.xpose.msra.mxu0 0.0
        %334 = vmatprep.subr.mxu0 0.0
        %335 = vmatpush1.xpose.msra.mxu0 0.0
        %336 = vmatprep.subr.mxu0 0.0
        %337 = vmatpush1.xpose.msra.mxu0 0.0
        %338 = vmatprep.subr.mxu0 0.0
        %339 = vmatpush1.xpose.msra.mxu0 %v312
        %340 = vmatprep.subr.mxu0 0.0
        %341 = vmatpush1.xpose.msra.mxu0 %v311
        %342 = vmatprep.subr.mxu0 0.0
        %343 = vmatpush1.xpose.msra.mxu0 %v310
        %344 = vmatprep.subr.mxu0 0.0
        %345 = vmatpush1.xpose.msra.mxu0 %v309
        %346 = vmatprep.subr.mxu0 0.0
        %347 = vmatpush1.xpose.msra.mxu0 %v308
        %348 = vmatprep.subr.mxu0 0.0
        %349 = vmatpush1.xpose.msra.mxu0 %v307
        %350 = vmatprep.subr.mxu0 0.0
        %351 = vmatpush1.xpose.msra.mxu0 %v306
        %352 = vmatprep.subr.mxu0 0.0
        %353 = vmatpush1.xpose.msra.mxu0 %v305
        %354 = vmatprep.subr.mxu0 0.0
        %355 = vmatpush2.xpose.msra.mxu0 0.0
        %356 = vmatprep.subr.mxu0 0.0
        %357 = vmatpush2.xpose.msra.mxu0 0.0
        %358 = vmatprep.subr.mxu0 0.0
        %359 = vmatpush2.xpose.msra.mxu0 0.0
        %360 = vmatprep.subr.mxu0 0.0
        %361 = vmatpush2.xpose.msra.mxu0 0.0
        %362 = vmatprep.subr.mxu0 0.0
        %363 = vmatpush2.xpose.msra.mxu0 0.0
        %364 = vmatprep.subr.mxu0 0.0
        %365 = vmatpush2.xpose.msra.mxu0 0.0
        %366 = vmatprep.subr.mxu0 0.0
        %367 = vmatpush2.xpose.msra.mxu0 0.0
        %368 = vmatprep.subr.mxu0 0.0
        %369 = vmatpush2.xpose.msra.mxu0 0.0
        %370 = vmatprep.subr.mxu0 0.0
        %371 = vmatpush2.xpose.msra.mxu0 0.0
        %372 = vmatprep.subr.mxu0 0.0
        %373 = vmatpush2.xpose.msra.mxu0 0.0
        %374 = vmatprep.subr.mxu0 0.0
        %375 = vmatpush2.xpose.msra.mxu0 0.0
        %376 = vmatprep.subr.mxu0 0.0
        %377 = vmatpush2.xpose.msra.mxu0 0.0
        %378 = vmatprep.subr.mxu0 0.0
        %379 = vmatpush2.xpose.msra.mxu0 0.0
        %380 = vmatprep.subr.mxu0 0.0
        %381 = vmatpush2.xpose.msra.mxu0 0.0
        %382 = vmatprep.subr.mxu0 0.0
        %383 = vmatpush2.xpose.msra.mxu0 0.0
        %384 = vmatprep.subr.mxu0 0.0
        %385 = vmatpush2.xpose.msra.mxu0 0.0
        %386 = vmatprep.mubr.f32.mxu0 0.0
        %387 = vmatmul.mubr.f32.gmra.mxu0 %v304
        %v388 = vpop.f32.mrf.mxu0
        %v389 = vadd.f32 0.0, %v388
        %v390 = vpop.f32.mrf.mxu0
        %391 = vdwg.mxu0
        %v392 = vadd.f32 %v321, %v389
        %vm393 = vcmask 523264
        %394 = vst.msk [vmem:[#allocation2] sm:$0xff] %vm393, %v392
        %v395 = vld [vmem:[#allocation3] sm:$0xff]
        %396 = vmatprep.subr.mxu0 0.0
        %397 = vmatpush1.xpose.msra.mxu0 0.0
        %398 = vmatprep.subr.mxu0 0.0
        %399 = vmatpush1.xpose.msra.mxu0 0.0
        %400 = vmatprep.subr.mxu0 0.0
        %401 = vmatpush1.xpose.msra.mxu0 0.0
        %402 = vmatprep.subr.mxu0 0.0
        %403 = vmatpush1.xpose.msra.mxu0 0.0
        %404 = vmatprep.subr.mxu0 0.0
        %405 = vmatpush1.xpose.msra.mxu0 0.0
        %406 = vmatprep.subr.mxu0 0.0
        %407 = vmatpush1.xpose.msra.mxu0 0.0
        %408 = vmatprep.subr.mxu0 0.0
        %409 = vmatpush1.xpose.msra.mxu0 0.0
        %410 = vmatprep.subr.mxu0 0.0
        %411 = vmatpush1.xpose.msra.mxu0 0.0
        %412 = vmatprep.subr.mxu0 0.0
        %413 = vmatpush1.xpose.msra.mxu0 %v320
        %414 = vmatprep.subr.mxu0 0.0
        %415 = vmatpush1.xpose.msra.mxu0 %v319
        %416 = vmatprep.subr.mxu0 0.0
        %417 = vmatpush1.xpose.msra.mxu0 %v318
        %418 = vmatprep.subr.mxu0 0.0
        %419 = vmatpush1.xpose.msra.mxu0 %v317
        %420 = vmatprep.subr.mxu0 0.0
        %421 = vmatpush1.xpose.msra.mxu0 %v316
        %422 = vmatprep.subr.mxu0 0.0
        %423 = vmatpush1.xpose.msra.mxu0 %v315
        %424 = vmatprep.subr.mxu0 0.0
        %425 = vmatpush1.xpose.msra.mxu0 %v314
        %426 = vmatprep.subr.mxu0 0.0
        %427 = vmatpush1.xpose.msra.mxu0 %v313
        %428 = vmatprep.subr.mxu0 0.0
        %429 = vmatpush2.xpose.msra.mxu0 0.0
        %430 = vmatprep.subr.mxu0 0.0
        %431 = vmatpush2.xpose.msra.mxu0 0.0
        %432 = vmatprep.subr.mxu0 0.0
        %433 = vmatpush2.xpose.msra.mxu0 0.0
        %434 = vmatprep.subr.mxu0 0.0
        %435 = vmatpush2.xpose.msra.mxu0 0.0
        %436 = vmatprep.subr.mxu0 0.0
        %437 = vmatpush2.xpose.msra.mxu0 0.0
        %438 = vmatprep.subr.mxu0 0.0
        %439 = vmatpush2.xpose.msra.mxu0 0.0
        %440 = vmatprep.subr.mxu0 0.0
        %441 = vmatpush2.xpose.msra.mxu0 0.0
        %442 = vmatprep.subr.mxu0 0.0
        %443 = vmatpush2.xpose.msra.mxu0 0.0
        %444 = vmatprep.subr.mxu0 0.0
        %445 = vmatpush2.xpose.msra.mxu0 0.0
        %446 = vmatprep.subr.mxu0 0.0
        %447 = vmatpush2.xpose.msra.mxu0 0.0
        %448 = vmatprep.subr.mxu0 0.0
        %449 = vmatpush2.xpose.msra.mxu0 0.0
        %450 = vmatprep.subr.mxu0 0.0
        %451 = vmatpush2.xpose.msra.mxu0 0.0
        %452 = vmatprep.subr.mxu0 0.0
        %453 = vmatpush2.xpose.msra.mxu0 0.0
        %454 = vmatprep.subr.mxu0 0.0
        %455 = vmatpush2.xpose.msra.mxu0 0.0
        %456 = vmatprep.subr.mxu0 0.0
        %457 = vmatpush2.xpose.msra.mxu0 0.0
        %458 = vmatprep.subr.mxu0 0.0
        %459 = vmatpush2.xpose.msra.mxu0 0.0
        %460 = vmatprep.mubr.f32.mxu0 0.0
        %461 = vmatmul.mubr.f32.gmra.mxu0 %v304
        %v462 = vpop.f32.mrf.mxu0
        %v463 = vadd.f32 0.0, %v462
        %v464 = vpop.f32.mrf.mxu0
        %465 = vdwg.mxu0
        %v466 = vadd.f32 %v395, %v463
        %467 = vst.msk [vmem:[#allocation3] sm:$0xff] %vm393, %v466
        // Predicated region
        $region71: #{tpu_custom_call.1} parent=31 // pred_check
          %p468 = pneg %p224
        $region72: #{tpu_custom_call.1} parent=31 // pred_check_branch
          %470 = sbr.rel (%p468) target = $region74
        $region73: #{tpu_custom_call.1} parent=31 // pred_region
          %v471 = vld [vmem:[#allocation2] sm:$0xff]
          %v472 = vmul.f32 %v471, 0.5
          %v473 = vtanh.pop %v472
          %v474 = vadd.f32 %v473, 1.0
          %v475 = vmul.f32 %v472, %v474
          %v476 = vld [vmem:[#allocation3] sm:$0xff]
          %v477 = vmul.f32 %v475, %v476
          %478 = vst.msk [vmem:[#allocation2] sm:$0xff] %vm393, %v477
          %s479 = smul.u32 128, 1
          %s480 = sshll.u32 %s479, 4
          %481 = dma.done [#allocation5], %s480
          %v482 = vld [vmem:[#allocation2] sm:$0xff]
          %v483 = vld [vmem:[#allocation4] sm:$0xff]
          %v484 = vld [vmem:[#allocation4 + $0x8] sm:$0xff]
          %v485 = vld [vmem:[#allocation4 + $0x10] sm:$0xff]
          %v486 = vld [vmem:[#allocation4 + $0x18] sm:$0xff]
          %v487 = vld [vmem:[#allocation4 + $0x20] sm:$0xff]
          %v488 = vld [vmem:[#allocation4 + $0x28] sm:$0xff]
          %v489 = vld [vmem:[#allocation4 + $0x30] sm:$0xff]
          %v490 = vld [vmem:[#allocation4 + $0x38] sm:$0xff]
          %v491 = vld [vmem:[#allocation4 + $0x40] sm:$0xff]
          %v492 = vld [vmem:[#allocation4 + $0x48] sm:$0xff]
          %v493 = vld [vmem:[#allocation4 + $0x50] sm:$0xff]
          %v494 = vld [vmem:[#allocation4 + $0x58] sm:$0xff]
          %v495 = vld [vmem:[#allocation4 + $0x60] sm:$0xff]
          %v496 = vld [vmem:[#allocation4 + $0x68] sm:$0xff]
          %v497 = vld [vmem:[#allocation4 + $0x70] sm:$0xff]
          %v498 = vld [vmem:[#allocation4 + $0x78] sm:$0xff]
          %v500 = vsel %vm393, %v482, 0
          %v503 = vsel %vm393, %v483, 0
          %v506 = vsel %vm393, %v484, 0
          %v509 = vsel %vm393, %v485, 0
          %v512 = vsel %vm393, %v486, 0
          %v515 = vsel %vm393, %v487, 0
          %v518 = vsel %vm393, %v488, 0
          %v521 = vsel %vm393, %v489, 0
          %v524 = vsel %vm393, %v490, 0
          %v527 = vsel %vm393, %v491, 0
          %v530 = vsel %vm393, %v492, 0
          %v533 = vsel %vm393, %v493, 0
          %v536 = vsel %vm393, %v494, 0
          %v539 = vsel %vm393, %v495, 0
          %v542 = vsel %vm393, %v496, 0
          %v545 = vsel %vm393, %v497, 0
          %v548 = vsel %vm393, %v498, 0
          %550 = vmatprep.subr.mxu0 0.0
          %551 = vmatpush1.xpose.msra.mxu0 %v548
          %552 = vmatprep.subr.mxu0 0.0
          %553 = vmatpush1.xpose.msra.mxu0 %v545
          %554 = vmatprep.subr.mxu0 0.0
          %555 = vmatpush1.xpose.msra.mxu0 %v542
          %556 = vmatprep.subr.mxu0 0.0
          %557 = vmatpush1.xpose.msra.mxu0 %v539
          %558 = vmatprep.subr.mxu0 0.0
          %559 = vmatpush1.xpose.msra.mxu0 %v536
          %560 = vmatprep.subr.mxu0 0.0
          %561 = vmatpush1.xpose.msra.mxu0 %v533
          %562 = vmatprep.subr.mxu0 0.0
          %563 = vmatpush1.xpose.msra.mxu0 %v530
          %564 = vmatprep.subr.mxu0 0.0
          %565 = vmatpush1.xpose.msra.mxu0 %v527
          %566 = vmatprep.subr.mxu0 0.0
          %567 = vmatpush1.xpose.msra.mxu0 %v524
          %568 = vmatprep.subr.mxu0 0.0
          %569 = vmatpush1.xpose.msra.mxu0 %v521
          %570 = vmatprep.subr.mxu0 0.0
          %571 = vmatpush1.xpose.msra.mxu0 %v518
          %572 = vmatprep.subr.mxu0 0.0
          %573 = vmatpush1.xpose.msra.mxu0 %v515
          %574 = vmatprep.subr.mxu0 0.0
          %575 = vmatpush1.xpose.msra.mxu0 %v512
          %576 = vmatprep.subr.mxu0 0.0
          %577 = vmatpush1.xpose.msra.mxu0 %v509
          %578 = vmatprep.subr.mxu0 0.0
          %579 = vmatpush1.xpose.msra.mxu0 %v506
          %580 = vmatprep.subr.mxu0 0.0
          %581 = vmatpush1.xpose.msra.mxu0 %v503
          %582 = vmatprep.subr.mxu0 0.0
          %583 = vmatpush2.xpose.msra.mxu0 0.0
          %584 = vmatprep.subr.mxu0 0.0
          %585 = vmatpush2.xpose.msra.mxu0 0.0
          %586 = vmatprep.subr.mxu0 0.0
          %587 = vmatpush2.xpose.msra.mxu0 0.0
          %588 = vmatprep.subr.mxu0 0.0
          %589 = vmatpush2.xpose.msra.mxu0 0.0
          %590 = vmatprep.subr.mxu0 0.0
          %591 = vmatpush2.xpose.msra.mxu0 0.0
          %592 = vmatprep.subr.mxu0 0.0
          %593 = vmatpush2.xpose.msra.mxu0 0.0
          %594 = vmatprep.subr.mxu0 0.0
          %595 = vmatpush2.xpose.msra.mxu0 0.0
          %596 = vmatprep.subr.mxu0 0.0
          %597 = vmatpush2.xpose.msra.mxu0 0.0
          %598 = vmatprep.subr.mxu0 0.0
          %599 = vmatpush2.xpose.msra.mxu0 0.0
          %600 = vmatprep.subr.mxu0 0.0
          %601 = vmatpush2.xpose.msra.mxu0 0.0
          %602 = vmatprep.subr.mxu0 0.0
          %603 = vmatpush2.xpose.msra.mxu0 0.0
          %604 = vmatprep.subr.mxu0 0.0
          %605 = vmatpush2.xpose.msra.mxu0 0.0
          %606 = vmatprep.subr.mxu0 0.0
          %607 = vmatpush2.xpose.msra.mxu0 0.0
          %608 = vmatprep.subr.mxu0 0.0
          %609 = vmatpush2.xpose.msra.mxu0 0.0
          %610 = vmatprep.subr.mxu0 0.0
          %611 = vmatpush2.xpose.msra.mxu0 0.0
          %612 = vmatprep.subr.mxu0 0.0
          %613 = vmatpush2.xpose.msra.mxu0 0.0
          %614 = vmatprep.mubr.f32.mxu0 0.0
          %615 = vmatmul.mubr.f32.gmra.mxu0 %v500
          %v616 = vpop.f32.mrf.mxu0
          %v617 = vadd.f32 0.0, %v616
          %v618 = vpop.f32.mrf.mxu0
          %619 = vdwg.mxu0
          %620 = vst [vmem:[%s208] sm:$0xff] %v617
        $region74: #{tpu_custom_call.1} parent=31 // pred_fallthru
          _
        %s621 = sand.u32 %s118, 1
        %s622 = scalar_lea.sflag [#allocation7], %s621
        %s623 = sand.u32 %s118, 1
        %s624 = smul.addr %s623, 8
        %s625 = scalar_lea.vmem [#allocation6], %s624
        // Predicated region
        $region75: #{tpu_custom_call.1} parent=31 // pred_check
          %p626 = pneg %p128
        $region76: #{tpu_custom_call.1} parent=31 // pred_check_branch
          %628 = sbr.rel (%p626) target = $region78
        $region77: #{tpu_custom_call.1} parent=31 // pred_region
          %s630 = ssub.s32 128, 128
          %631 = vsyncadd %s622, %s630
          %s632 = smul.addr %s22, 128
          %s633 = scalar_lea.hbm %s4, %s632
          %s635 = sshll.u32 %s625, 4
          %s636 = int_to_ptr.vmem [resolvable:$true] %s635
          %638 = dma.vmem_to_hbm [thread:$0]  %s636, 128, %s633, %s622
        $region78: #{tpu_custom_call.1} parent=31 // pred_fallthru
          _
      $region32: #{tpu_custom_call.1} parent=5 // pred_fallthru
        _
      %p639 = scmp.le.s32.totalorder 2, %s13
      // Predicated region
      $region79: #{tpu_custom_call.1} parent=5 // pred_check
        %p640 = pneg %p639
      $region80: #{tpu_custom_call.1} parent=5 // pred_check_branch
        %642 = sbr.rel (%p640) target = $region82
      $region81: #{tpu_custom_call.1} parent=5 // pred_region
        %s643 = ssub.s32 %s13, 2
        // Predicated region
        $region83: #{tpu_custom_call.1} parent=81 // pred_check
          %p644 = pneg %p134
        $region84: #{tpu_custom_call.1} parent=81 // pred_check_branch
          %646 = sbr.rel (%p644) target = $region86
        $region85: #{tpu_custom_call.1} parent=81 // pred_region
          %s647 = sand.u32 %s119, 1
          %s648 = scalar_lea.sflag [#allocation7], %s647
          %s649 = sand.u32 %s119, 1
          %s650 = smul.addr %s649, 8
          %s651 = scalar_lea.vmem [#allocation6], %s650
          %652 = dma.done %s648, 128
        $region86: #{tpu_custom_call.1} parent=81 // pred_fallthru
          _
      $region82: #{tpu_custom_call.1} parent=5 // pred_fallthru
        _
    $region6: #{tpu_custom_call.1} parent=1 // loop_footer
      %s17 = sadd.s32 1, %s13
    $region7: #{tpu_custom_call.1} parent=1 // loop_footer_branch
      %12 = sbr.rel target = $region3
    $region8: #{tpu_custom_call.1} parent=1 // loop_exit
      _
    %653 = vsyncpa [#allocation7], 1
    %s654 = scalar_lea.sflag [#allocation7], 1
    %655 = vsyncpa %s654, 1
  %656 = vsyncmov [#allocation5]
  %s657 = vpop.sfrf %656
  %p658 = scmp.eq.s32.totalorder %s657, 0
  %p659 = pneg %p658
  %661 = shalt.err (%p659)

</llo_original>
